<compile_context>
chip_gen: v7x
topology: tpu7x:2x2x1
jax: 0.10.0
libtpu: 0.0.40
codegen_flags: <defaults>
</compile_context>

<pallas_src>
import functools

import jax
import jax.numpy as jnp
from jax.experimental import pallas as pl
from jax.experimental.pallas import tpu as pltpu


def _bce_loss_kernel(img_ref, txt_ref, out_ref, *, temperature, reduction, mxu_dtype):
    img = img_ref[...].astype(jnp.float32)
    txt = txt_ref[...].astype(jnp.float32)

    # torch.nn.functional.normalize(x): x / max(||x||_2, 1e-12)
    # == x * rsqrt(max(sum(x*x), 1e-24)); rsqrt lands on the EUP slot.
    eps_sq = jnp.float32(1e-24)
    inv_img = jax.lax.rsqrt(jnp.maximum(jnp.sum(img * img, axis=-1, keepdims=True), eps_sq))
    inv_txt = jax.lax.rsqrt(jnp.maximum(jnp.sum(txt * txt, axis=-1, keepdims=True), eps_sq))
    img_n = img * inv_img
    txt_n = txt * inv_txt

    inv_temp = jnp.float32(1.0 / temperature)
    neg100 = jnp.float32(-100.0)

    # Diagonal terms via a direct per-row dot (no BxB iota/mask/select, no
    # dependency on the MXU result): diag_s[i] = <img_n[i], txt_n[i]> / T.
    diag_s = jnp.sum(img_n * txt_n, axis=-1, keepdims=True) * inv_temp       # (B, 1)
    diag_ls = jnp.maximum(jnp.log(diag_s), neg100)                            # B logs
    diag_l1 = jnp.maximum(jnp.log(1.0 - diag_s), neg100)                      # B logs

    # score = img_n @ txt_n.T / temperature, contracting dim 1 of both
    # operands so the MXU consumes the RHS in its native orientation (no
    # transpose temp).  bf16 inputs keep bf16 MXU operands.
    lhs = img_n.astype(mxu_dtype)
    rhs = txt_n.astype(mxu_dtype)
    score = jax.lax.dot_general(
        lhs, rhs,
        dimension_numbers=(((1,), (1,)), ((), ())),
        preferred_element_type=jnp.float32,
    ) * inv_temp

    b = score.shape[0]

    # nn.BCELoss with target = eye(b), each log clamped at -100:
    #   sum(loss) = -( sum_all l1 + sum_diag (ls_ii - l1_ii) )
    # where l1 = max(log(1-s), -100), ls = max(log(s), -100).
    # Clamp is applied before the subtraction (matches reference ordering).
    l1 = jnp.maximum(jnp.log(1.0 - score), neg100)

    total = -(jnp.sum(l1) + jnp.sum(diag_ls - diag_l1))

    if reduction == "mean":
        out_ref[0] = total / jnp.float32(b * b)
    else:  # "sum" (validated in the wrapper)
        out_ref[0] = total


def bce_loss(image_embeddings, text_embeddings, *, temperature, reduction="mean"):
    if reduction not in ("mean", "sum"):
        # TODO(synk): reduction='none' would need a lane-dense (tm, B) VMEM
        # out_spec (not per-element stores) to avoid masked partial stores.
        raise ValueError("only 'mean' and 'sum' reductions implemented")

    B, D = image_embeddings.shape
    assert text_embeddings.shape == (B, D)
    assert image_embeddings.dtype == text_embeddings.dtype

    # Keep bf16 operands on the MXU when inputs are bf16; otherwise f32.
    mxu_dtype = (jnp.bfloat16 if image_embeddings.dtype == jnp.bfloat16
                 else jnp.float32)

    kernel = functools.partial(
        _bce_loss_kernel,
        temperature=float(temperature),
        reduction=reduction,
        mxu_dtype=mxu_dtype,
    )

    bytes_in = (image_embeddings.size * image_embeddings.dtype.itemsize
                + text_embeddings.size * text_embeddings.dtype.itemsize)
    cost = pl.CostEstimate(
        # matmul + normalize (2x) + per-row diag dot + BCE elementwise
        flops=2 * B * B * D + 9 * B * D + 4 * B * B,
        # log(1-score) tile + 2*B diag logs + 2*B rsqrt
        transcendentals=B * B + 4 * B,
        bytes_accessed=bytes_in + 4,
    )

    out = pl.pallas_call(
        kernel,
        out_shape=jax.ShapeDtypeStruct((1,), jnp.float32),
        in_specs=[
            pl.BlockSpec(memory_space=pltpu.MemorySpace.VMEM),
            pl.BlockSpec(memory_space=pltpu.MemorySpace.VMEM),
        ],
        out_specs=pl.BlockSpec(memory_space=pltpu.MemorySpace.SMEM),
        cost_estimate=cost,
    )(image_embeddings, text_embeddings)
    return out[0]


def _reference(image_embeddings, text_embeddings, *, temperature, reduction="mean"):
    # Pure-JAX reference mirroring the PyTorch module exactly (eye target,
    # two full logs), for a silent sanity check of the optimized kernel.
    def norm(x):
        n = jnp.linalg.norm(x, axis=1, keepdims=True)
        return x / jnp.maximum(n, 1e-12)

    i = norm(image_embeddings.astype(jnp.float32))
    t = norm(text_embeddings.astype(jnp.float32))
    score = i @ t.T / temperature
    target = jnp.eye(score.shape[0], dtype=jnp.float32)
    log_s = jnp.maximum(jnp.log(score), -100.0)
    log_1ms = jnp.maximum(jnp.log(1.0 - score), -100.0)
    loss = -(target * log_s + (1.0 - target) * log_1ms)
    return jnp.mean(loss) if reduction == "mean" else jnp.sum(loss)


if __name__ == "__main__":
    # Module hyper-parameters (deterministic, in-script): reduction='mean',
    # temperature=2.0.  Inputs are strictly positive so the scores
    # (cosine similarity / temperature) lie in (0, 1) -- nn.BCELoss's domain.
    batch, dim = 8, 32
    temperature = 2.0
    key = jax.random.PRNGKey(0)
    k_img, k_txt = jax.random.split(key)
    image_embeddings = jnp.abs(jax.random.normal(k_img, (batch, dim), jnp.float32)) + 0.1
    text_embeddings = jnp.abs(jax.random.normal(k_txt, (batch, dim), jnp.float32)) + 0.1

    loss = bce_loss(
        image_embeddings, text_embeddings, temperature=temperature, reduction="mean"
    )
    loss = jax.block_until_ready(loss)

    ref = _reference(
        image_embeddings, text_embeddings, temperature=temperature, reduction="mean"
    )
    assert jnp.allclose(loss, ref, rtol=1e-5, atol=1e-5), (loss, ref)

    print("KERNEL_OK")
</pallas_src>

<mosaic_0001>
module attributes {stable_mosaic.version = 11 : i64} {
  func.func @_bce_loss_kernel(%arg0: memref<8x32xf32, #tpu.memory_space<vmem>>, %arg1: memref<8x32xf32, #tpu.memory_space<vmem>>, %arg2: memref<1xf32, #tpu.memory_space<smem>>) attributes {dimension_semantics = [], scalar_prefetch = 0 : i64, scratch_operands = 0 : i64, tpu.core_type = #tpu.core_type<tc>} {
    %c0 = arith.constant 0 : index
    %c0_0 = arith.constant 0 : index
    %0 = vector.load %arg0[%c0, %c0_0] : memref<8x32xf32, #tpu.memory_space<vmem>>, vector<8x32xf32>
    %c0_1 = arith.constant 0 : index
    %c0_2 = arith.constant 0 : index
    %1 = vector.load %arg1[%c0_1, %c0_2] : memref<8x32xf32, #tpu.memory_space<vmem>>, vector<8x32xf32>
    %2 = arith.mulf %0, %0 : vector<8x32xf32>
    %cst = arith.constant dense<0.000000e+00> : vector<8xf32>
    %3 = vector.multi_reduction <add>, %2, %cst [1] : vector<8x32xf32> to vector<8xf32>
    %4 = vector.shape_cast %3 : vector<8xf32> to vector<8x1xf32>
    %cst_3 = arith.constant 1.000000e-24 : f32
    %5 = vector.broadcast %cst_3 : f32 to vector<8x1xf32>
    %6 = arith.maximumf %4, %5 : vector<8x1xf32>
    %7 = math.rsqrt %6 : vector<8x1xf32>
    %8 = arith.mulf %1, %1 : vector<8x32xf32>
    %cst_4 = arith.constant dense<0.000000e+00> : vector<8xf32>
    %9 = vector.multi_reduction <add>, %8, %cst_4 [1] : vector<8x32xf32> to vector<8xf32>
    %10 = vector.shape_cast %9 : vector<8xf32> to vector<8x1xf32>
    %cst_5 = arith.constant 1.000000e-24 : f32
    %11 = vector.broadcast %cst_5 : f32 to vector<8x1xf32>
    %12 = arith.maximumf %10, %11 : vector<8x1xf32>
    %13 = math.rsqrt %12 : vector<8x1xf32>
    %14 = vector.broadcast %7 : vector<8x1xf32> to vector<8x32xf32>
    %15 = arith.mulf %0, %14 : vector<8x32xf32>
    %16 = vector.broadcast %13 : vector<8x1xf32> to vector<8x32xf32>
    %17 = arith.mulf %1, %16 : vector<8x32xf32>
    %18 = arith.mulf %15, %17 : vector<8x32xf32>
    %cst_6 = arith.constant dense<0.000000e+00> : vector<8xf32>
    %19 = vector.multi_reduction <add>, %18, %cst_6 [1] : vector<8x32xf32> to vector<8xf32>
    %20 = vector.shape_cast %19 : vector<8xf32> to vector<8x1xf32>
    %cst_7 = arith.constant 5.000000e-01 : f32
    %21 = vector.broadcast %cst_7 : f32 to vector<8x1xf32>
    %22 = arith.mulf %20, %21 : vector<8x1xf32>
    %23 = math.log %22 : vector<8x1xf32>
    %cst_8 = arith.constant -1.000000e+02 : f32
    %24 = vector.broadcast %cst_8 : f32 to vector<8x1xf32>
    %25 = arith.maximumf %23, %24 : vector<8x1xf32>
    %cst_9 = arith.constant 1.000000e+00 : f32
    %26 = vector.broadcast %cst_9 : f32 to vector<8x1xf32>
    %27 = arith.subf %26, %22 : vector<8x1xf32>
    %28 = math.log %27 : vector<8x1xf32>
    %cst_10 = arith.constant -1.000000e+02 : f32
    %29 = vector.broadcast %cst_10 : f32 to vector<8x1xf32>
    %30 = arith.maximumf %28, %29 : vector<8x1xf32>
    %cst_11 = arith.constant dense<0.000000e+00> : vector<8x8xf32>
    %31 = tpu.matmul %15, %17, %cst_11 {dimension_numbers = #tpu.dot_dimension_numbers<[1], [1], [0], [0], [0, 0, 1, 0], [], []>} : vector<8x32xf32>, vector<8x32xf32>, vector<8x8xf32> -> vector<8x8xf32>
    %cst_12 = arith.constant 5.000000e-01 : f32
    %32 = vector.broadcast %cst_12 : f32 to vector<8x8xf32>
    %33 = arith.mulf %31, %32 : vector<8x8xf32>
    %cst_13 = arith.constant 1.000000e+00 : f32
    %34 = vector.broadcast %cst_13 : f32 to vector<8x8xf32>
    %35 = arith.subf %34, %33 : vector<8x8xf32>
    %36 = math.log %35 : vector<8x8xf32>
    %cst_14 = arith.constant -1.000000e+02 : f32
    %37 = vector.broadcast %cst_14 : f32 to vector<8x8xf32>
    %38 = arith.maximumf %36, %37 : vector<8x8xf32>
    %39 = vector.shape_cast %38 : vector<8x8xf32> to vector<1x8x8xf32>
    %cst_15 = arith.constant dense<0.000000e+00> : vector<1xf32>
    %40 = vector.multi_reduction <add>, %39, %cst_15 [1, 2] : vector<1x8x8xf32> to vector<1xf32>
    %41 = vector.shape_cast %40 : vector<1xf32> to vector<1x1x1xf32>
    %42 = vector.extract %41[0, 0, 0] : f32 from vector<1x1x1xf32>
    %43 = arith.subf %25, %30 : vector<8x1xf32>
    %44 = vector.shape_cast %43 : vector<8x1xf32> to vector<1x8x1xf32>
    %cst_16 = arith.constant dense<0.000000e+00> : vector<1xf32>
    %45 = vector.multi_reduction <add>, %44, %cst_16 [1, 2] : vector<1x8x1xf32> to vector<1xf32>
    %46 = vector.shape_cast %45 : vector<1xf32> to vector<1x1x1xf32>
    %47 = vector.extract %46[0, 0, 0] : f32 from vector<1x1x1xf32>
    %48 = arith.addf %42, %47 : f32
    %cst_17 = arith.constant 0.000000e+00 : f32
    %49 = arith.subf %cst_17, %48 : f32
    %cst_18 = arith.constant 6.400000e+01 : f32
    %50 = arith.divf %49, %cst_18 : f32
    %c0_19 = arith.constant 0 : index
    %51 = memref.load %arg2[%c0_19] : memref<1xf32, #tpu.memory_space<smem>>
    memref.store %50, %arg2[%c0_19] : memref<1xf32, #tpu.memory_space<smem>>
    return
  }
}

</mosaic_0001>

<llo_original>
// kernel: tpu_custom_call.1
$region0: #{tpu_custom_call.1}
  #allocation0 [shape = 'u32[]', space=smem, size = 0x4, offset = 0x4, fixed_abs, tag = 'smem constant byte address 0x4 - core index']
  #allocation1 [shape = 'u32[144,128]{1,0:T(1,128)}', space=vmem, size = 0x12000, scoped, tag = 'internal scratch']
  %s0 = inlined_call_operand.hbm [shape: f32[8,32], index: 0, kind: input, shape index: {}]
  %s1 = inlined_call_operand.hbm [shape: f32[8,32], index: 1, kind: input, shape index: {}]
  %s2 = inlined_call_operand.hbm [shape: f32[1], index: 2, kind: output, shape index: {}]
  %s3 = sld [smem:[#allocation0]]
  $region26: #{tpu_custom_call.1} parent=0
    _
  %s5 = ssub.s32 1, %s3
  %s6 = scalar_select 0, %s5, %s3
  $region1: #{tpu_custom_call.1} parent=0
    #allocation2 [shape = 'u8[4096]{0}', space=vmem, size = 0x1000, scoped, tag = 'input window, operand 0, single buffered']
    #allocation3 [shape = 's32[1]{0}', space=sflag, size = 0x4, scoped, tag = 'scoped memory for tpu_custom_call.1']
    #allocation4 [shape = 's32[1]{0}', space=sflag, size = 0x4, scoped, tag = 'scoped memory for tpu_custom_call.1']
    #allocation5 [shape = 'u8[4096]{0}', space=vmem, size = 0x1000, scoped, tag = 'input window, operand 1, single buffered']
    #allocation6 [shape = 's32[1]{0}', space=sflag, size = 0x4, scoped, tag = 'scoped memory for tpu_custom_call.1']
    #allocation7 [shape = 'u8[512]{0}', space=smem, size = 0x200, scoped, tag = 'output window, operand 0, single buffered']
    %7 = vsyncpa [#allocation3], 0
    %8 = vsyncpa [#allocation6], 0
    %9 = vsyncpa [#allocation4], 0
    // Predicated region
    $region2: #{tpu_custom_call.1} parent=1 // pred_check
      _
    $region3: #{tpu_custom_call.1} parent=1 // pred_check_branch
      %11 = sbr.rel (0) target = $region5
    $region4: #{tpu_custom_call.1} parent=1 // pred_region
      %s13 = ssub.s32 128, 128
      %14 = vsyncadd [#allocation3], %s13
      %s16 = sshll.u32 [#allocation2], 4
      %s17 = int_to_ptr.vmem [resolvable:$true] %s16
      %19 = dma.hbm_to_vmem [thread:$0]  %s0, 128, %s17, [#allocation3]
    $region5: #{tpu_custom_call.1} parent=1 // pred_fallthru
      _
    // Predicated region
    $region6: #{tpu_custom_call.1} parent=1 // pred_check
      _
    $region7: #{tpu_custom_call.1} parent=1 // pred_check_branch
      %21 = sbr.rel (0) target = $region9
    $region8: #{tpu_custom_call.1} parent=1 // pred_region
      %s23 = ssub.s32 128, 128
      %24 = vsyncadd [#allocation6], %s23
      %s26 = sshll.u32 [#allocation5], 4
      %s27 = int_to_ptr.vmem [resolvable:$true] %s26
      %29 = dma.hbm_to_vmem [thread:$0]  %s1, 128, %s27, [#allocation6]
    $region9: #{tpu_custom_call.1} parent=1 // pred_fallthru
      _
    // Predicated region
    $region10: #{tpu_custom_call.1} parent=1 // pred_check
      _
    $region11: #{tpu_custom_call.1} parent=1 // pred_check_branch
      %31 = sbr.rel (0) target = $region13
    $region12: #{tpu_custom_call.1} parent=1 // pred_region
      %32 = dma.done [#allocation3], 128
    $region13: #{tpu_custom_call.1} parent=1 // pred_fallthru
      _
    // Predicated region
    $region14: #{tpu_custom_call.1} parent=1 // pred_check
      _
    $region15: #{tpu_custom_call.1} parent=1 // pred_check_branch
      %34 = sbr.rel (0) target = $region17
    $region16: #{tpu_custom_call.1} parent=1 // pred_region
      %35 = dma.done [#allocation6], 128
    $region17: #{tpu_custom_call.1} parent=1 // pred_fallthru
      _
    %v36 = vld [vmem:[#allocation2] sm:$0xff]
    %v37 = vld [vmem:[#allocation5] sm:$0xff]
    %v38 = vmul.f32 %v36, %v36
    %vm39 = vcmask 261120
    %v40 = vsel %vm39, %v38, 0.0
    %41 = vadd.xlane.f32.xlu0 %v40
    %v42 = vpop.xlane.xlu0 %41
    %v43 = vmax.f32 %v42, 1e-24
    %v44 = vrsqrt.pop %v43
    %v45 = vmul.f32 %v37, %v37
    %v46 = vsel %vm39, %v45, 0.0
    %47 = vadd.xlane.f32.xlu0 %v46
    %v48 = vpop.xlane.xlu0 %47
    %v49 = vmax.f32 %v48, 1e-24
    %v50 = vrsqrt.pop %v49
    %v51 = vmul.f32 %v36, %v44
    %v52 = vmul.f32 %v37, %v50
    %v53 = vmul.f32 %v51, %v52
    %v54 = vsel %vm39, %v53, 0.0
    %55 = vadd.xlane.f32.xlu0 %v54
    %v56 = vpop.xlane.xlu0 %55
    %v57 = vmul.f32 %v56, 0.5
    %v58 = vlog2.pop %v57
    %v59 = vmul.f32 %v58, 0.6931472
    %v60 = vmax.f32 %v59, -100.0
    %v61 = vsub.f32 1.0, %v57
    %v62 = vlog2.pop %v61
    %v63 = vmul.f32 %v62, 0.6931472
    %v64 = vmax.f32 %v63, -100.0
    %v66 = vsel %vm39, %v51, 0
    %v69 = vsel %vm39, %v52, 0
    %71 = vmatprep.subr.mxu0 0.0
    %72 = vmatpush1.xpose.msra.mxu0 %v69
    %73 = vmatprep.subr.mxu0 0.0
    %74 = vmatpush1.xpose.msra.mxu0 0.0
    %75 = vmatprep.subr.mxu0 0.0
    %76 = vmatpush1.xpose.msra.mxu0 0.0
    %77 = vmatprep.subr.mxu0 0.0
    %78 = vmatpush1.xpose.msra.mxu0 0.0
    %79 = vmatprep.subr.mxu0 0.0
    %80 = vmatpush1.xpose.msra.mxu0 0.0
    %81 = vmatprep.subr.mxu0 0.0
    %82 = vmatpush1.xpose.msra.mxu0 0.0
    %83 = vmatprep.subr.mxu0 0.0
    %84 = vmatpush1.xpose.msra.mxu0 0.0
    %85 = vmatprep.subr.mxu0 0.0
    %86 = vmatpush1.xpose.msra.mxu0 0.0
    %87 = vmatprep.subr.mxu0 0.0
    %88 = vmatpush1.xpose.msra.mxu0 0.0
    %89 = vmatprep.subr.mxu0 0.0
    %90 = vmatpush1.xpose.msra.mxu0 0.0
    %91 = vmatprep.subr.mxu0 0.0
    %92 = vmatpush1.xpose.msra.mxu0 0.0
    %93 = vmatprep.subr.mxu0 0.0
    %94 = vmatpush1.xpose.msra.mxu0 0.0
    %95 = vmatprep.subr.mxu0 0.0
    %96 = vmatpush1.xpose.msra.mxu0 0.0
    %97 = vmatprep.subr.mxu0 0.0
    %98 = vmatpush1.xpose.msra.mxu0 0.0
    %99 = vmatprep.subr.mxu0 0.0
    %100 = vmatpush1.xpose.msra.mxu0 0.0
    %101 = vmatprep.subr.mxu0 0.0
    %102 = vmatpush1.xpose.msra.mxu0 0.0
    %103 = vmatprep.subr.mxu0 0.0
    %104 = vmatpush1.xpose.msra.mxu0 0.0
    %105 = vmatprep.subr.mxu0 0.0
    %106 = vmatpush1.xpose.msra.mxu0 0.0
    %107 = vmatprep.subr.mxu0 0.0
    %108 = vmatpush1.xpose.msra.mxu0 0.0
    %109 = vmatprep.subr.mxu0 0.0
    %110 = vmatpush1.xpose.msra.mxu0 0.0
    %111 = vmatprep.subr.mxu0 0.0
    %112 = vmatpush1.xpose.msra.mxu0 0.0
    %113 = vmatprep.subr.mxu0 0.0
    %114 = vmatpush1.xpose.msra.mxu0 0.0
    %115 = vmatprep.subr.mxu0 0.0
    %116 = vmatpush1.xpose.msra.mxu0 0.0
    %117 = vmatprep.subr.mxu0 0.0
    %118 = vmatpush1.xpose.msra.mxu0 0.0
    %119 = vmatprep.subr.mxu0 0.0
    %120 = vmatpush1.xpose.msra.mxu0 0.0
    %121 = vmatprep.subr.mxu0 0.0
    %122 = vmatpush1.xpose.msra.mxu0 0.0
    %123 = vmatprep.subr.mxu0 0.0
    %124 = vmatpush1.xpose.msra.mxu0 0.0
    %125 = vmatprep.subr.mxu0 0.0
    %126 = vmatpush1.xpose.msra.mxu0 0.0
    %127 = vmatprep.subr.mxu0 0.0
    %128 = vmatpush1.xpose.msra.mxu0 0.0
    %129 = vmatprep.subr.mxu0 0.0
    %130 = vmatpush1.xpose.msra.mxu0 0.0
    %131 = vmatprep.subr.mxu0 0.0
    %132 = vmatpush1.xpose.msra.mxu0 0.0
    %133 = vmatprep.subr.mxu0 0.0
    %134 = vmatpush1.xpose.msra.mxu0 0.0
    %135 = vmatprep.mubr.f32.mxu0 0.0
    %136 = vmatmul.mubr.f32.gmra.mrb[0].mxu0 %v66
    %v137 = vpop.f32.mrb[0].mxu0
    %v138 = vadd.f32 0.0, %v137
    %v139 = vpop.f32.mrb[0].mxu0
    %140 = vdwg.mxu0
    %v141 = vmul.f32 %v138, 0.5
    %v142 = vsub.f32 1.0, %v141
    %v143 = vlog2.pop %v142
    %v144 = vmul.f32 %v143, 0.6931472
    %v145 = vmax.f32 %v144, -100.0
    %vm146 = vcmask 64512
    %v147 = vsel %vm146, %v145, 0.0
    %148 = vadd.xlane.f32.xlu0 %v147
    %v149 = vpop.xlane.xlu0 %148
    %v150 = vrot.slane %v149, 4
    %v151 = vadd.f32 %v149, %v150
    %v152 = vrot.slane %v151, 2
    %v153 = vadd.f32 %v151, %v152
    %v154 = vrot.slane %v153, 1
    %v155 = vadd.f32 %v153, %v154
    %s156 = vtos %v155
    %v157 = vsub.f32 %v60, %v64
    %vm158 = vcmask 7168
    %v159 = vsel %vm158, %v157, 0.0
    %160 = vadd.xlane.f32.xlu0 %v159
    %v161 = vpop.xlane.xlu0 %160
    %v162 = vrot.slane %v161, 4
    %v163 = vadd.f32 %v161, %v162
    %v164 = vrot.slane %v163, 2
    %v165 = vadd.f32 %v163, %v164
    %v166 = vrot.slane %v165, 1
    %v167 = vadd.f32 %v165, %v166
    %s168 = vtos %v167
    %s169 = sadd.f32 %s156, %s168
    %s170 = ssub.f32 0.0, %s169
    %v171 = vrcp.pop 64.0
    %s172 = vtos %v171
    %s173 = smul.f32 %s170, %s172
    %s174 = scalar_lea.smem [#allocation7], 0
    %175 = sst [smem:[%s174]] %s173
    // Predicated region
    $region18: #{tpu_custom_call.1} parent=1 // pred_check
      _
    $region19: #{tpu_custom_call.1} parent=1 // pred_check_branch
      %177 = sbr.rel (0) target = $region21
    $region20: #{tpu_custom_call.1} parent=1 // pred_region
      %s179 = ssub.s32 16, 16
      %180 = vsyncadd [#allocation4], %s179
      %183 = dma.smem_to_hbm [#allocation7], 16, %s2, [#allocation4]
    $region21: #{tpu_custom_call.1} parent=1 // pred_fallthru
      _
    // Predicated region
    $region22: #{tpu_custom_call.1} parent=1 // pred_check
      _
    $region23: #{tpu_custom_call.1} parent=1 // pred_check_branch
      %185 = sbr.rel (0) target = $region25
    $region24: #{tpu_custom_call.1} parent=1 // pred_region
      %186 = dma.done [#allocation4], 16
    $region25: #{tpu_custom_call.1} parent=1 // pred_fallthru
      _
    %187 = sfence
    %188 = vsyncpa [#allocation3], 1
    %189 = vsyncpa [#allocation6], 1
    %190 = vsyncpa [#allocation4], 1

</llo_original>
